<compile_context>
chip_gen: v7x
topology: tpu7x:2x2x1
jax: 0.10.0
libtpu: 0.0.40
codegen_flags: <defaults>
</compile_context>

<pallas_src>
import functools

import jax
import jax.numpy as jnp
from jax import lax
from jax.experimental import pallas as pl
from jax.experimental.pallas import tpu as pltpu

_LANE = 128
_SUBLANE = 8
_OUT_PAD = 128   # lane-dense padded width of the output block


def _round_up(x, m):
    return ((x + m - 1) // m) * m


def _se_kernel(x_ref, w1_ref, w2_ref, o_ref, acc_ref, *,
               inv_hw, hw, hidden, s_tile, ragged):
    """One (batch-block, spatial-chunk) grid step.

    x_ref  : (nb, C, s_tile)    input chunk (native dtype)
    w1_ref : (C, hidden)        first FC weights, (in, out) layout, VMEM-resident
    w2_ref : (hidden, 128)      second FC weights, lane-padded, VMEM-resident
    o_ref  : (1, nb, 128)       lane-dense padded output block for this batch-block
    acc_ref: (nb, C, 128) f32   lane-dense per-channel running partial sums
    """
    si = pl.program_id(1)

    @pl.when(si == 0)
    def _():
        acc_ref[...] = jnp.zeros_like(acc_ref)

    # ---- hot loop: streaming add, pure VPU (DMA/HBM bound) -------------------
    xb = x_ref[...].astype(jnp.float32)                      # (nb, C, s_tile)
    if ragged:
        # Zero lanes beyond the true H*W extent (only matters on the last tile;
        # it's a no-op elsewhere).  Keeps the HBM copy-free wrapper exact.
        lane = lax.broadcasted_iota(jnp.int32, xb.shape, 2) + si * s_tile
        xb = jnp.where(lane < hw, xb, 0.0)

    partial = xb[:, :, 0:_LANE]
    for j in range(1, s_tile // _LANE):                       # static, lane-aligned
        partial = partial + xb[:, :, j * _LANE:(j + 1) * _LANE]
    acc_ref[...] += partial                                   # full-width vst

    # ---- finalize once per batch-block ---------------------------------------
    @pl.when(si == pl.num_programs(1) - 1)
    def _():
        # Single XLU lane-reduce, then mean.
        y = jnp.sum(acc_ref[...], axis=-1, keepdims=True) * inv_hw    # (nb, C, 1)
        # FC1: broadcast-mul + cross-sublane reduce -> (nb, hidden).  Once per
        # block; MXU is not worth it at SE-typical C.
        h = jnp.sum(y * w1_ref[...][None, :, :], axis=1)
        h = jnp.maximum(h, 0.0)                                        # ReLU
        # FC2: hidden is tiny & static -> unrolled lane-dense broadcast FMAs.
        z = h[:, 0:1] * w2_ref[0:1, :]                                 # (nb, 128)
        for j in range(1, hidden):
            z = z + h[:, j:j + 1] * w2_ref[j:j + 1, :]
        o_ref[...] = jax.nn.sigmoid(z)[None].astype(o_ref.dtype)


def se_layer(x, w1, w2, *, block_target_bytes=None, batches_per_block=None):
    """x: (B, C, H, W); w1: (C//r, C) torch layout; w2: (5, C//r) torch layout."""
    b, c, h, w = x.shape
    hidden = w1.shape[0]
    n_out = w2.shape[0]
    hw = h * w

    assert hidden >= 1, "channel // reduction must be >= 1"
    assert w1.shape[1] == c and w2.shape[1] == hidden

    # --- generation-aware VMEM budget -----------------------------------------
    vmem_cap = 64 * 1024 * 1024                       # conservative (v7x) fallback
    try:
        vmem_cap = int(pltpu.get_tpu_info().vmem_capacity_bytes)
    except Exception:
        pass
    if vmem_cap >= 96 * 1024 * 1024:                  # v5e / v6e: 128 MiB VMEM
        vmem_limit, auto_target = 64 * 1024 * 1024, 8 * 1024 * 1024
    else:                                             # v7x: 64 MiB VMEM
        vmem_limit, auto_target = 32 * 1024 * 1024, 4 * 1024 * 1024
    target = int(block_target_bytes) if block_target_bytes is not None else auto_target

    itemsize = x.dtype.itemsize
    hw_pad = _round_up(hw, _LANE)

    # --- tiling: biggest lane-aligned spatial tile, then pack whole batches ----
    s_tile = min(hw_pad, max(_LANE, (target // (c * _LANE * itemsize)) * _LANE))
    nb = 1
    if s_tile == hw_pad:
        nb = min(b, max(1, target // max(1, c * hw_pad * itemsize)))
    if batches_per_block is not None:
        nb = min(b, max(1, int(batches_per_block)))

    # Safety: keep (double-buffered x block + accumulator + weights + out block)
    # comfortably under the scoped VMEM limit for this generation.
    def _est(nb_, st_):
        c8 = _round_up(c, _SUBLANE)
        xb = 2 * nb_ * c8 * st_ * itemsize
        acc = nb_ * c8 * _LANE * 4
        wts = c8 * _round_up(hidden, _LANE) * 4 + _round_up(hidden, _SUBLANE) * _OUT_PAD * 4
        ob = 2 * _round_up(nb_, _SUBLANE) * _OUT_PAD * 4
        return xb + acc + wts + ob

    while _est(nb, s_tile) > int(0.8 * vmem_limit):
        if nb > 1:
            nb = max(1, nb // 2)
        elif s_tile > _LANE:
            s_tile = max(_LANE, (s_tile // 2 // _LANE) * _LANE)
        else:
            break

    n_s = -(-hw // s_tile)
    n_bb = -(-b // nb)
    ragged = (n_s * s_tile) != hw

    # Free, contiguity-preserving view; NO padded HBM copy of the activation.
    x3 = x.reshape(b, c, hw)

    # Weights in (in, out) layout; only w2 is lane-padded (tiny).
    w1_t = w1.astype(jnp.float32).T                                   # (C, hidden)
    w2_t = jnp.zeros((hidden, _OUT_PAD), jnp.float32).at[:, :n_out].set(
        w2.astype(jnp.float32).T)

    kernel = functools.partial(_se_kernel, inv_hw=1.0 / float(hw), hw=hw,
                               hidden=hidden, s_tile=s_tile, ragged=ragged)

    out = pl.pallas_call(
        kernel,
        out_shape=jax.ShapeDtypeStruct((n_bb, nb, _OUT_PAD), jnp.float32),
        grid_spec=pltpu.PrefetchScalarGridSpec(
            num_scalar_prefetch=0,
            grid=(n_bb, n_s),
            in_specs=[
                pl.BlockSpec((nb, c, s_tile), lambda bi, si: (bi, 0, si)),
                pl.BlockSpec((c, hidden), lambda bi, si: (0, 0)),      # resident
                pl.BlockSpec((hidden, _OUT_PAD), lambda bi, si: (0, 0)),  # resident
            ],
            out_specs=pl.BlockSpec((1, nb, _OUT_PAD), lambda bi, si: (bi, 0, 0)),
            scratch_shapes=[pltpu.VMEM((nb, c, _LANE), jnp.float32)],
        ),
        compiler_params=pltpu.CompilerParams(
            dimension_semantics=("parallel", "arbitrary"),
            vmem_limit_bytes=vmem_limit,
        ),
    )(x3, w1_t, w2_t)

    y = out.reshape(n_bb * nb, _OUT_PAD)[:b, :n_out]
    return y.reshape(b, n_out, 1, 1).astype(x.dtype)


def _reference(x, w1, w2):
    # Pure-JAX reference mirroring the PyTorch module.
    b = x.shape[0]
    y = jnp.mean(x.astype(jnp.float32), axis=(2, 3))          # (B, C)
    y = jnp.maximum(y @ w1.astype(jnp.float32).T, 0.0)        # (B, C//r)
    y = jax.nn.sigmoid(y @ w2.astype(jnp.float32).T)          # (B, 5)
    return y.reshape(b, w2.shape[0], 1, 1).astype(x.dtype)


if __name__ == "__main__":
    reduction = 32
    key = jax.random.PRNGKey(0)

    # (shape, kwargs): exercise single-step, multi-spatial-tile accumulation,
    # ragged H*W masking, partial batch blocks, and C not a multiple of 8.
    cases = [
        ((2, 64, 16, 16), {}),                                        # one step
        ((2, 64, 32, 32), {"block_target_bytes": 64 * 1024}),         # multi-tile
        ((2, 64, 10, 10), {}),                                        # ragged hw
        ((3, 64, 12, 12), {"batches_per_block": 2}),                  # partial batch block
        ((2, 36, 9, 9), {}),                                          # C % 8 != 0, hidden=1
    ]

    for shape, kwargs in cases:
        B, C, H, W = shape
        hidden = max(1, C // reduction)
        kx, k1, k2, key = jax.random.split(key, 4)
        x = jax.random.normal(kx, (B, C, H, W), dtype=jnp.float32)
        # PyTorch Linear weight layout: (out, in), no bias.
        w1 = jax.random.normal(k1, (hidden, C), dtype=jnp.float32) * 0.1
        w2 = jax.random.normal(k2, (5, hidden), dtype=jnp.float32) * 0.1

        out = jax.block_until_ready(se_layer(x, w1, w2, **kwargs))
        ref = _reference(x, w1, w2)
        assert out.shape == (B, 5, 1, 1), out.shape
        assert jnp.allclose(out, ref, atol=1e-5, rtol=1e-4), (
            f"mismatch vs reference at shape {shape} kwargs {kwargs}")

    print("KERNEL_OK")
</pallas_src>

<mosaic_0001>
module attributes {stable_mosaic.version = 11 : i64} {
  func.func @_se_kernel(%arg0: i32, %arg1: i32, %arg2: memref<2x64x256xf32, #tpu.memory_space<vmem>>, %arg3: memref<64x2xf32, #tpu.memory_space<vmem>>, %arg4: memref<2x128xf32, #tpu.memory_space<vmem>>, %arg5: memref<1x2x128xf32, #tpu.memory_space<vmem>>, %arg6: memref<2x64x128xf32, #tpu.memory_space<vmem>>) attributes {dimension_semantics = [#tpu.dimension_semantics<parallel>, #tpu.dimension_semantics<arbitrary>], iteration_bounds = array<i64: 1, 1>, scalar_prefetch = 0 : i64, scratch_operands = 1 : i64, tpu.core_type = #tpu.core_type<tc>, window_params = [{transform_indices = @transform_0, window_bounds = array<i64: 2, 64, 256>}, {pipeline_mode = #tpu.pipeline_mode<synchronous>, transform_indices = @transform_1, window_bounds = array<i64: 64, 2>}, {pipeline_mode = #tpu.pipeline_mode<synchronous>, transform_indices = @transform_2, window_bounds = array<i64: 2, 128>}, {transform_indices = @transform_3, window_bounds = array<i64: 1, 2, 128>}]} {
    %c0_i32 = arith.constant 0 : i32
    %0 = arith.cmpi eq, %arg1, %c0_i32 : i32
    %1 = arith.extui %0 : i1 to i32
    %c0_i32_0 = arith.constant 0 : i32
    %2 = arith.cmpi ne, %1, %c0_i32_0 : i32
    scf.if %2 {
      %cst = arith.constant 0.000000e+00 : f32
      %13 = vector.broadcast %cst : f32 to vector<2x64x128xf32>
      %c0_11 = arith.constant 0 : index
      %c0_12 = arith.constant 0 : index
      %c0_13 = arith.constant 0 : index
      %14 = vector.load %arg6[%c0_11, %c0_12, %c0_13] : memref<2x64x128xf32, #tpu.memory_space<vmem>>, vector<2x64x128xf32>
      tpu.vector_store %arg6[%c0_11, %c0_12, %c0_13], %13 {strides = array<i32>} : memref<2x64x128xf32, #tpu.memory_space<vmem>>, vector<2x64x128xf32>,
    } else {
    }
    %c0 = arith.constant 0 : index
    %c0_1 = arith.constant 0 : index
    %c0_2 = arith.constant 0 : index
    %3 = vector.load %arg2[%c0, %c0_1, %c0_2] : memref<2x64x256xf32, #tpu.memory_space<vmem>>, vector<2x64x256xf32>
    %4 = vector.extract_strided_slice %3 {offsets = [0, 0, 0], sizes = [2, 64, 128], strides = [1, 1, 1]} : vector<2x64x256xf32> to vector<2x64x128xf32>
    %5 = vector.extract_strided_slice %3 {offsets = [0, 0, 128], sizes = [2, 64, 128], strides = [1, 1, 1]} : vector<2x64x256xf32> to vector<2x64x128xf32>
    %6 = arith.addf %4, %5 : vector<2x64x128xf32>
    %c0_3 = arith.constant 0 : index
    %c0_4 = arith.constant 0 : index
    %c0_5 = arith.constant 0 : index
    %7 = vector.load %arg6[%c0_3, %c0_4, %c0_5] : memref<2x64x128xf32, #tpu.memory_space<vmem>>, vector<2x64x128xf32>
    %8 = arith.addf %7, %6 : vector<2x64x128xf32>
    %c0_6 = arith.constant 0 : index
    %c0_7 = arith.constant 0 : index
    %c0_8 = arith.constant 0 : index
    %9 = vector.load %arg6[%c0_6, %c0_7, %c0_8] : memref<2x64x128xf32, #tpu.memory_space<vmem>>, vector<2x64x128xf32>
    tpu.vector_store %arg6[%c0_6, %c0_7, %c0_8], %8 {strides = array<i32>} : memref<2x64x128xf32, #tpu.memory_space<vmem>>, vector<2x64x128xf32>,
    %c0_i32_9 = arith.constant 0 : i32
    %10 = arith.cmpi eq, %arg1, %c0_i32_9 : i32
    %11 = arith.extui %10 : i1 to i32
    %c0_i32_10 = arith.constant 0 : i32
    %12 = arith.cmpi ne, %11, %c0_i32_10 : i32
    scf.if %12 {
      %c0_11 = arith.constant 0 : index
      %c0_12 = arith.constant 0 : index
      %c0_13 = arith.constant 0 : index
      %13 = vector.load %arg6[%c0_11, %c0_12, %c0_13] : memref<2x64x128xf32, #tpu.memory_space<vmem>>, vector<2x64x128xf32>
      %cst = arith.constant dense<0.000000e+00> : vector<2x64xf32>
      %14 = vector.multi_reduction <add>, %13, %cst [2] : vector<2x64x128xf32> to vector<2x64xf32>
      %15 = vector.shape_cast %14 : vector<2x64xf32> to vector<2x64x1xf32>
      %cst_14 = arith.constant 3.906250e-03 : f32
      %16 = vector.broadcast %cst_14 : f32 to vector<2x64x1xf32>
      %17 = arith.mulf %15, %16 : vector<2x64x1xf32>
      %c0_15 = arith.constant 0 : index
      %c0_16 = arith.constant 0 : index
      %18 = vector.load %arg3[%c0_15, %c0_16] : memref<64x2xf32, #tpu.memory_space<vmem>>, vector<64x2xf32>
      %19 = vector.shape_cast %18 : vector<64x2xf32> to vector<1x64x2xf32>
      %20 = vector.broadcast %17 : vector<2x64x1xf32> to vector<2x64x2xf32>
      %21 = vector.broadcast %19 : vector<1x64x2xf32> to vector<2x64x2xf32>
      %22 = arith.mulf %20, %21 : vector<2x64x2xf32>
      %cst_17 = arith.constant dense<0.000000e+00> : vector<2x2xf32>
      %23 = vector.multi_reduction <add>, %22, %cst_17 [1] : vector<2x64x2xf32> to vector<2x2xf32>
      %cst_18 = arith.constant 0.000000e+00 : f32
      %24 = vector.broadcast %cst_18 : f32 to vector<2x2xf32>
      %25 = arith.maximumf %23, %24 : vector<2x2xf32>
      %26 = vector.extract_strided_slice %25 {offsets = [0, 0], sizes = [2, 1], strides = [1, 1]} : vector<2x2xf32> to vector<2x1xf32>
      %c0_19 = arith.constant 0 : index
      %c0_20 = arith.constant 0 : index
      %27 = vector.load %arg4[%c0_19, %c0_20] : memref<2x128xf32, #tpu.memory_space<vmem>>, vector<1x128xf32>
      %28 = vector.broadcast %26 : vector<2x1xf32> to vector<2x128xf32>
      %29 = vector.broadcast %27 : vector<1x128xf32> to vector<2x128xf32>
      %30 = arith.mulf %28, %29 : vector<2x128xf32>
      %31 = vector.extract_strided_slice %25 {offsets = [0, 1], sizes = [2, 1], strides = [1, 1]} : vector<2x2xf32> to vector<2x1xf32>
      %c1 = arith.constant 1 : index
      %c0_21 = arith.constant 0 : index
      %32 = vector.load %arg4[%c1, %c0_21] : memref<2x128xf32, #tpu.memory_space<vmem>>, vector<1x128xf32>
      %33 = vector.broadcast %31 : vector<2x1xf32> to vector<2x128xf32>
      %34 = vector.broadcast %32 : vector<1x128xf32> to vector<2x128xf32>
      %35 = arith.mulf %33, %34 : vector<2x128xf32>
      %36 = arith.addf %30, %35 : vector<2x128xf32>
      %37 = arith.negf %36 : vector<2x128xf32>
      %38 = math.exp %37 : vector<2x128xf32>
      %cst_22 = arith.constant 1.000000e+00 : f32
      %39 = vector.broadcast %cst_22 : f32 to vector<2x128xf32>
      %40 = arith.addf %39, %38 : vector<2x128xf32>
      %41 = arith.divf %39, %40 : vector<2x128xf32>
      %42 = vector.shape_cast %41 : vector<2x128xf32> to vector<1x2x128xf32>
      %c0_23 = arith.constant 0 : index
      %c0_24 = arith.constant 0 : index
      %c0_25 = arith.constant 0 : index
      %43 = vector.load %arg5[%c0_23, %c0_24, %c0_25] : memref<1x2x128xf32, #tpu.memory_space<vmem>>, vector<1x2x128xf32>
      tpu.vector_store %arg5[%c0_23, %c0_24, %c0_25], %42 {strides = array<i32>} : memref<1x2x128xf32, #tpu.memory_space<vmem>>, vector<1x2x128xf32>,
    } else {
    }
    return
  }
  func.func @transform_0(%arg0: i32, %arg1: i32) -> (i32, i32, i32) {
    %c0_i32 = arith.constant 0 : i32
    %c0_i32_0 = arith.constant 0 : i32
    return %arg0, %c0_i32, %arg1 : i32, i32, i32
  }
  func.func @transform_1(%arg0: i32, %arg1: i32) -> (i32, i32) {
    %c0_i32 = arith.constant 0 : i32
    %c0_i32_0 = arith.constant 0 : i32
    %c0_i32_1 = arith.constant 0 : i32
    return %c0_i32, %c0_i32_0 : i32, i32
  }
  func.func @transform_2(%arg0: i32, %arg1: i32) -> (i32, i32) {
    %c0_i32 = arith.constant 0 : i32
    %c0_i32_0 = arith.constant 0 : i32
    %c0_i32_1 = arith.constant 0 : i32
    return %c0_i32, %c0_i32_0 : i32, i32
  }
  func.func @transform_3(%arg0: i32, %arg1: i32) -> (i32, i32, i32) {
    %c0_i32 = arith.constant 0 : i32
    %c0_i32_0 = arith.constant 0 : i32
    %c0_i32_1 = arith.constant 0 : i32
    return %arg0, %c0_i32, %c0_i32_0 : i32, i32, i32
  }
}

</mosaic_0001>

<llo_original>
// kernel: tpu_custom_call.1
$region0: #{tpu_custom_call.1}
  #allocation0 [shape = 'u32[]', space=smem, size = 0x4, offset = 0x4, fixed_abs, tag = 'smem constant byte address 0x4 - core index']
  #allocation1 [shape = 'u32[144,128]{1,0:T(1,128)}', space=vmem, size = 0x12000, scoped, tag = 'internal scratch']
  #allocation2 [shape = 'f32[2,64,128]{2,1,0:T(8,128)}', space=vmem, size = 0x10000, scoped, tag = 'scratch operand']
  %s0 = inlined_call_operand.hbm [shape: f32[2,64,256], index: 0, kind: input, shape index: {}]
  %s1 = inlined_call_operand.vmem [shape: f32[64,2], index: 1, kind: input, shape index: {}]
  %s2 = inlined_call_operand.vmem [shape: f32[2,128], index: 2, kind: input, shape index: {}]
  %s3 = inlined_call_operand.hbm [shape: f32[1,2,128], index: 3, kind: output, shape index: {}]
  %s4 = sld [smem:[#allocation0]]
  $region34: #{tpu_custom_call.1} parent=0
    _
  %s6 = ssub.s32 1, %s4
  %s7 = scalar_select 0, %s6, %s4
  $region1: #{tpu_custom_call.1} parent=0
    #allocation3 [shape = 'u8[131072]{0}', space=vmem, size = 0x20000, scoped, tag = 'input window, operand 0, single buffered']
    #allocation4 [shape = 's32[1]{0}', space=sflag, size = 0x4, scoped, tag = 'scoped memory for tpu_custom_call.1']
    #allocation5 [shape = 's32[1]{0}', space=sflag, size = 0x4, scoped, tag = 'scoped memory for tpu_custom_call.1']
    #allocation6 [shape = 'u8[1024]{0}', space=vmem, size = 0x400, scoped, tag = 'output window, operand 0, single buffered']
    %8 = vsyncpa [#allocation4], 0
    %9 = vsyncpa [#allocation5], 0
    // Predicated region
    $region2: #{tpu_custom_call.1} parent=1 // pred_check
      _
    $region3: #{tpu_custom_call.1} parent=1 // pred_check_branch
      %11 = sbr.rel (0) target = $region5
    $region4: #{tpu_custom_call.1} parent=1 // pred_region
      %s13 = ssub.s32 4096, 4096
      %14 = vsyncadd [#allocation4], %s13
      %s15 = sshll.u32 [#allocation3], 4
      %s16 = int_to_ptr.vmem [resolvable:$true] %s15
      %21 = dma.hbm_to_vmem [thread:$0]  %s0, 4096, %s16, [#allocation4], 256, 256, 16
    $region5: #{tpu_custom_call.1} parent=1 // pred_fallthru
      _
    // Predicated region
    $region6: #{tpu_custom_call.1} parent=1 // pred_check
      _
    $region7: #{tpu_custom_call.1} parent=1 // pred_check_branch
      %23 = sbr.rel (0) target = $region9
    $region8: #{tpu_custom_call.1} parent=1 // pred_region
      _
    $region9: #{tpu_custom_call.1} parent=1 // pred_fallthru
      _
    // Predicated region
    $region10: #{tpu_custom_call.1} parent=1 // pred_check
      _
    $region11: #{tpu_custom_call.1} parent=1 // pred_check_branch
      %25 = sbr.rel (0) target = $region13
    $region12: #{tpu_custom_call.1} parent=1 // pred_region
      _
    $region13: #{tpu_custom_call.1} parent=1 // pred_fallthru
      _
    // Predicated region
    $region14: #{tpu_custom_call.1} parent=1 // pred_check
      _
    $region15: #{tpu_custom_call.1} parent=1 // pred_check_branch
      %27 = sbr.rel (0) target = $region17
    $region16: #{tpu_custom_call.1} parent=1 // pred_region
      %28 = dma.done [#allocation4], 4096
    $region17: #{tpu_custom_call.1} parent=1 // pred_fallthru
      _
    %p29 = scmp.eq.s32.totalorder 0, 0
    // Predicated region
    $region18: #{tpu_custom_call.1} parent=1 // pred_check
      %p30 = pneg %p29
    $region19: #{tpu_custom_call.1} parent=1 // pred_check_branch
      %32 = sbr.rel (%p30) target = $region21
    $region20: #{tpu_custom_call.1} parent=1 // pred_region
      %33 = vst [vmem:[#allocation2] sm:$0xff] 0.0
      %34 = vst [vmem:[#allocation2 + $0x8] sm:$0xff] 0.0
      %35 = vst [vmem:[#allocation2 + $0x10] sm:$0xff] 0.0
      %36 = vst [vmem:[#allocation2 + $0x18] sm:$0xff] 0.0
      %37 = vst [vmem:[#allocation2 + $0x20] sm:$0xff] 0.0
      %38 = vst [vmem:[#allocation2 + $0x28] sm:$0xff] 0.0
      %39 = vst [vmem:[#allocation2 + $0x30] sm:$0xff] 0.0
      %40 = vst [vmem:[#allocation2 + $0x38] sm:$0xff] 0.0
      %41 = vst [vmem:[#allocation2 + $0x40] sm:$0xff] 0.0
      %42 = vst [vmem:[#allocation2 + $0x48] sm:$0xff] 0.0
      %43 = vst [vmem:[#allocation2 + $0x50] sm:$0xff] 0.0
      %44 = vst [vmem:[#allocation2 + $0x58] sm:$0xff] 0.0
      %45 = vst [vmem:[#allocation2 + $0x60] sm:$0xff] 0.0
      %46 = vst [vmem:[#allocation2 + $0x68] sm:$0xff] 0.0
      %47 = vst [vmem:[#allocation2 + $0x70] sm:$0xff] 0.0
      %48 = vst [vmem:[#allocation2 + $0x78] sm:$0xff] 0.0
    $region21: #{tpu_custom_call.1} parent=1 // pred_fallthru
      _
    %v49 = vld [vmem:[#allocation3] sm:$0xff]
    %v50 = vld [vmem:[#allocation3 + $0x8] sm:$0xff]
    %v51 = vld [vmem:[#allocation3 + $0x10] sm:$0xff]
    %v52 = vld [vmem:[#allocation3 + $0x18] sm:$0xff]
    %v53 = vld [vmem:[#allocation3 + $0x20] sm:$0xff]
    %v54 = vld [vmem:[#allocation3 + $0x28] sm:$0xff]
    %v55 = vld [vmem:[#allocation3 + $0x30] sm:$0xff]
    %v56 = vld [vmem:[#allocation3 + $0x38] sm:$0xff]
    %v57 = vld [vmem:[#allocation3 + $0x40] sm:$0xff]
    %v58 = vld [vmem:[#allocation3 + $0x48] sm:$0xff]
    %v59 = vld [vmem:[#allocation3 + $0x50] sm:$0xff]
    %v60 = vld [vmem:[#allocation3 + $0x58] sm:$0xff]
    %v61 = vld [vmem:[#allocation3 + $0x60] sm:$0xff]
    %v62 = vld [vmem:[#allocation3 + $0x68] sm:$0xff]
    %v63 = vld [vmem:[#allocation3 + $0x70] sm:$0xff]
    %v64 = vld [vmem:[#allocation3 + $0x78] sm:$0xff]
    %v65 = vld [vmem:[#allocation3 + $0x80] sm:$0xff]
    %v66 = vld [vmem:[#allocation3 + $0x88] sm:$0xff]
    %v67 = vld [vmem:[#allocation3 + $0x90] sm:$0xff]
    %v68 = vld [vmem:[#allocation3 + $0x98] sm:$0xff]
    %v69 = vld [vmem:[#allocation3 + $0xa0] sm:$0xff]
    %v70 = vld [vmem:[#allocation3 + $0xa8] sm:$0xff]
    %v71 = vld [vmem:[#allocation3 + $0xb0] sm:$0xff]
    %v72 = vld [vmem:[#allocation3 + $0xb8] sm:$0xff]
    %v73 = vld [vmem:[#allocation3 + $0xc0] sm:$0xff]
    %v74 = vld [vmem:[#allocation3 + $0xc8] sm:$0xff]
    %v75 = vld [vmem:[#allocation3 + $0xd0] sm:$0xff]
    %v76 = vld [vmem:[#allocation3 + $0xd8] sm:$0xff]
    %v77 = vld [vmem:[#allocation3 + $0xe0] sm:$0xff]
    %v78 = vld [vmem:[#allocation3 + $0xe8] sm:$0xff]
    %v79 = vld [vmem:[#allocation3 + $0xf0] sm:$0xff]
    %v80 = vld [vmem:[#allocation3 + $0xf8] sm:$0xff]
    %v81 = vadd.f32 %v49, %v50
    %v82 = vadd.f32 %v51, %v52
    %v83 = vadd.f32 %v53, %v54
    %v84 = vadd.f32 %v55, %v56
    %v85 = vadd.f32 %v57, %v58
    %v86 = vadd.f32 %v59, %v60
    %v87 = vadd.f32 %v61, %v62
    %v88 = vadd.f32 %v63, %v64
    %v89 = vadd.f32 %v65, %v66
    %v90 = vadd.f32 %v67, %v68
    %v91 = vadd.f32 %v69, %v70
    %v92 = vadd.f32 %v71, %v72
    %v93 = vadd.f32 %v73, %v74
    %v94 = vadd.f32 %v75, %v76
    %v95 = vadd.f32 %v77, %v78
    %v96 = vadd.f32 %v79, %v80
    %v97 = vld [vmem:[#allocation2] sm:$0xff]
    %v98 = vld [vmem:[#allocation2 + $0x8] sm:$0xff]
    %v99 = vld [vmem:[#allocation2 + $0x10] sm:$0xff]
    %v100 = vld [vmem:[#allocation2 + $0x18] sm:$0xff]
    %v101 = vld [vmem:[#allocation2 + $0x20] sm:$0xff]
    %v102 = vld [vmem:[#allocation2 + $0x28] sm:$0xff]
    %v103 = vld [vmem:[#allocation2 + $0x30] sm:$0xff]
    %v104 = vld [vmem:[#allocation2 + $0x38] sm:$0xff]
    %v105 = vld [vmem:[#allocation2 + $0x40] sm:$0xff]
    %v106 = vld [vmem:[#allocation2 + $0x48] sm:$0xff]
    %v107 = vld [vmem:[#allocation2 + $0x50] sm:$0xff]
    %v108 = vld [vmem:[#allocation2 + $0x58] sm:$0xff]
    %v109 = vld [vmem:[#allocation2 + $0x60] sm:$0xff]
    %v110 = vld [vmem:[#allocation2 + $0x68] sm:$0xff]
    %v111 = vld [vmem:[#allocation2 + $0x70] sm:$0xff]
    %v112 = vld [vmem:[#allocation2 + $0x78] sm:$0xff]
    %v113 = vadd.f32 %v97, %v81
    %v114 = vadd.f32 %v98, %v82
    %v115 = vadd.f32 %v99, %v83
    %v116 = vadd.f32 %v100, %v84
    %v117 = vadd.f32 %v101, %v85
    %v118 = vadd.f32 %v102, %v86
    %v119 = vadd.f32 %v103, %v87
    %v120 = vadd.f32 %v104, %v88
    %v121 = vadd.f32 %v105, %v89
    %v122 = vadd.f32 %v106, %v90
    %v123 = vadd.f32 %v107, %v91
    %v124 = vadd.f32 %v108, %v92
    %v125 = vadd.f32 %v109, %v93
    %v126 = vadd.f32 %v110, %v94
    %v127 = vadd.f32 %v111, %v95
    %v128 = vadd.f32 %v112, %v96
    %129 = vst [vmem:[#allocation2] sm:$0xff] %v113
    %130 = vst [vmem:[#allocation2 + $0x8] sm:$0xff] %v114
    %131 = vst [vmem:[#allocation2 + $0x10] sm:$0xff] %v115
    %132 = vst [vmem:[#allocation2 + $0x18] sm:$0xff] %v116
    %133 = vst [vmem:[#allocation2 + $0x20] sm:$0xff] %v117
    %134 = vst [vmem:[#allocation2 + $0x28] sm:$0xff] %v118
    %135 = vst [vmem:[#allocation2 + $0x30] sm:$0xff] %v119
    %136 = vst [vmem:[#allocation2 + $0x38] sm:$0xff] %v120
    %137 = vst [vmem:[#allocation2 + $0x40] sm:$0xff] %v121
    %138 = vst [vmem:[#allocation2 + $0x48] sm:$0xff] %v122
    %139 = vst [vmem:[#allocation2 + $0x50] sm:$0xff] %v123
    %140 = vst [vmem:[#allocation2 + $0x58] sm:$0xff] %v124
    %141 = vst [vmem:[#allocation2 + $0x60] sm:$0xff] %v125
    %142 = vst [vmem:[#allocation2 + $0x68] sm:$0xff] %v126
    %143 = vst [vmem:[#allocation2 + $0x70] sm:$0xff] %v127
    %144 = vst [vmem:[#allocation2 + $0x78] sm:$0xff] %v128
    // Predicated region
    $region22: #{tpu_custom_call.1} parent=1 // pred_check
      %p145 = pneg %p29
    $region23: #{tpu_custom_call.1} parent=1 // pred_check_branch
      %147 = sbr.rel (%p145) target = $region25
    $region24: #{tpu_custom_call.1} parent=1 // pred_region
      %v148 = vld [vmem:[#allocation2] sm:$0xff]
      %v149 = vld [vmem:[#allocation2 + $0x8] sm:$0xff]
      %v150 = vld [vmem:[#allocation2 + $0x10] sm:$0xff]
      %v151 = vld [vmem:[#allocation2 + $0x18] sm:$0xff]
      %v152 = vld [vmem:[#allocation2 + $0x20] sm:$0xff]
      %v153 = vld [vmem:[#allocation2 + $0x28] sm:$0xff]
      %v154 = vld [vmem:[#allocation2 + $0x30] sm:$0xff]
      %v155 = vld [vmem:[#allocation2 + $0x38] sm:$0xff]
      %v156 = vld [vmem:[#allocation2 + $0x40] sm:$0xff]
      %v157 = vld [vmem:[#allocation2 + $0x48] sm:$0xff]
      %v158 = vld [vmem:[#allocation2 + $0x50] sm:$0xff]
      %v159 = vld [vmem:[#allocation2 + $0x58] sm:$0xff]
      %v160 = vld [vmem:[#allocation2 + $0x60] sm:$0xff]
      %v161 = vld [vmem:[#allocation2 + $0x68] sm:$0xff]
      %v162 = vld [vmem:[#allocation2 + $0x70] sm:$0xff]
      %v163 = vld [vmem:[#allocation2 + $0x78] sm:$0xff]
      %164 = vadd.xlane.f32.xlu0 %v148
      %v165 = vpop.xlane.xlu0 %164
      %166 = vadd.xlane.f32.xlu0 %v149
      %v167 = vpop.xlane.xlu0 %166
      %168 = vadd.xlane.f32.xlu0 %v150
      %v169 = vpop.xlane.xlu0 %168
      %170 = vadd.xlane.f32.xlu0 %v151
      %v171 = vpop.xlane.xlu0 %170
      %172 = vadd.xlane.f32.xlu0 %v152
      %v173 = vpop.xlane.xlu0 %172
      %174 = vadd.xlane.f32.xlu0 %v153
      %v175 = vpop.xlane.xlu0 %174
      %176 = vadd.xlane.f32.xlu0 %v154
      %v177 = vpop.xlane.xlu0 %176
      %178 = vadd.xlane.f32.xlu0 %v155
      %v179 = vpop.xlane.xlu0 %178
      %180 = vadd.xlane.f32.xlu0 %v156
      %v181 = vpop.xlane.xlu0 %180
      %182 = vadd.xlane.f32.xlu0 %v157
      %v183 = vpop.xlane.xlu0 %182
      %184 = vadd.xlane.f32.xlu0 %v158
      %v185 = vpop.xlane.xlu0 %184
      %186 = vadd.xlane.f32.xlu0 %v159
      %v187 = vpop.xlane.xlu0 %186
      %188 = vadd.xlane.f32.xlu0 %v160
      %v189 = vpop.xlane.xlu0 %188
      %190 = vadd.xlane.f32.xlu0 %v161
      %v191 = vpop.xlane.xlu0 %190
      %192 = vadd.xlane.f32.xlu0 %v162
      %v193 = vpop.xlane.xlu0 %192
      %194 = vadd.xlane.f32.xlu0 %v163
      %v195 = vpop.xlane.xlu0 %194
      %v196 = vmul.f32 %v165, 0.00390625
      %v197 = vmul.f32 %v167, 0.00390625
      %v198 = vmul.f32 %v169, 0.00390625
      %v199 = vmul.f32 %v171, 0.00390625
      %v200 = vmul.f32 %v173, 0.00390625
      %v201 = vmul.f32 %v175, 0.00390625
      %v202 = vmul.f32 %v177, 0.00390625
      %v203 = vmul.f32 %v179, 0.00390625
      %v204 = vmul.f32 %v181, 0.00390625
      %v205 = vmul.f32 %v183, 0.00390625
      %v206 = vmul.f32 %v185, 0.00390625
      %v207 = vmul.f32 %v187, 0.00390625
      %v208 = vmul.f32 %v189, 0.00390625
      %v209 = vmul.f32 %v191, 0.00390625
      %v210 = vmul.f32 %v193, 0.00390625
      %v211 = vmul.f32 %v195, 0.00390625
      %v212 = vld [vmem:[%s1] sm:$0xff]
      %v213 = vld [vmem:[%s1 + $0x8] sm:$0xff]
      %v214 = vld [vmem:[%s1 + $0x10] sm:$0xff]
      %v215 = vld [vmem:[%s1 + $0x18] sm:$0xff]
      %v216 = vld [vmem:[%s1 + $0x20] sm:$0xff]
      %v217 = vld [vmem:[%s1 + $0x28] sm:$0xff]
      %v218 = vld [vmem:[%s1 + $0x30] sm:$0xff]
      %v219 = vld [vmem:[%s1 + $0x38] sm:$0xff]
      %v220 = vmul.f32 %v196, %v212
      %v221 = vmul.f32 %v197, %v213
      %v222 = vmul.f32 %v198, %v214
      %v223 = vmul.f32 %v199, %v215
      %v224 = vmul.f32 %v200, %v216
      %v225 = vmul.f32 %v201, %v217
      %v226 = vmul.f32 %v202, %v218
      %v227 = vmul.f32 %v203, %v219
      %v228 = vmul.f32 %v204, %v212
      %v229 = vmul.f32 %v205, %v213
      %v230 = vmul.f32 %v206, %v214
      %v231 = vmul.f32 %v207, %v215
      %v232 = vmul.f32 %v208, %v216
      %v233 = vmul.f32 %v209, %v217
      %v234 = vmul.f32 %v210, %v218
      %v235 = vmul.f32 %v211, %v219
      %vm236 = vcmask 15360
      %v237 = vsel %vm236, %v220, 0.0
      %v238 = vsel %vm236, %v221, 0.0
      %v239 = vadd.f32 %v237, %v238
      %v240 = vsel %vm236, %v222, 0.0
      %v241 = vadd.f32 %v239, %v240
      %v242 = vsel %vm236, %v223, 0.0
      %v243 = vadd.f32 %v241, %v242
      %v244 = vsel %vm236, %v224, 0.0
      %v245 = vadd.f32 %v243, %v244
      %v246 = vsel %vm236, %v225, 0.0
      %v247 = vadd.f32 %v245, %v246
      %v248 = vsel %vm236, %v226, 0.0
      %v249 = vadd.f32 %v247, %v248
      %v250 = vsel %vm236, %v227, 0.0
      %v251 = vadd.f32 %v249, %v250
      %v252 = vrot.slane %v251, 4
      %v253 = vadd.f32 %v251, %v252
      %v254 = vrot.slane %v253, 2
      %v255 = vadd.f32 %v253, %v254
      %v256 = vrot.slane %v255, 1
      %v257 = vadd.f32 %v255, %v256
      %v258 = vsel %vm236, %v228, 0.0
      %v259 = vsel %vm236, %v229, 0.0
      %v260 = vadd.f32 %v258, %v259
      %v261 = vsel %vm236, %v230, 0.0
      %v262 = vadd.f32 %v260, %v261
      %v263 = vsel %vm236, %v231, 0.0
      %v264 = vadd.f32 %v262, %v263
      %v265 = vsel %vm236, %v232, 0.0
      %v266 = vadd.f32 %v264, %v265
      %v267 = vsel %vm236, %v233, 0.0
      %v268 = vadd.f32 %v266, %v267
      %v269 = vsel %vm236, %v234, 0.0
      %v270 = vadd.f32 %v268, %v269
      %v271 = vsel %vm236, %v235, 0.0
      %v272 = vadd.f32 %v270, %v271
      %v273 = vrot.slane %v272, 4
      %v274 = vadd.f32 %v272, %v273
      %v275 = vrot.slane %v274, 2
      %v276 = vadd.f32 %v274, %v275
      %v277 = vrot.slane %v276, 1
      %v278 = vadd.f32 %v276, %v277
      %v279 = vmax.f32 %v257, 0.0
      %v280 = vmax.f32 %v278, 0.0
      %v281 = vld [vmem:[%s2] sm:$0x1]
      %283 = vset.pattern.permute.xlu0 0
      %284 = vperm.xlu0 %283, %v279
      %v285 = vpop.permute.xlu0 %284
      %288 = vset.pattern.permute.xlu0 0
      %289 = vperm.xlu0 %288, %v280
      %v290 = vpop.permute.xlu0 %289
      %v292 = vlaneseq
      %v293 = vshrl.u32 %v292, 7
      %v294 = vsub.s32 0, %v293
      %v295 = vrot.slane %v281, %v294
      %v296 = vmul.f32 %v285, %v295
      %v297 = vmul.f32 %v290, %v295
      %v298 = vld [vmem:[%s2 + $0x1] sm:$0x1]
      %299 = vset.pattern.permute.xlu0 1
      %300 = vperm.xlu0 %299, %v279
      %v301 = vpop.permute.xlu0 %300
      %303 = vset.pattern.permute.xlu0 1
      %304 = vperm.xlu0 %303, %v280
      %v305 = vpop.permute.xlu0 %304
      %v307 = vlaneseq
      %v308 = vshrl.u32 %v307, 7
      %v309 = vsub.s32 0, %v308
      %v310 = vrot.slane %v298, %v309
      %v311 = vmul.f32 %v301, %v310
      %v312 = vmul.f32 %v305, %v310
      %v313 = vadd.f32 %v296, %v311
      %v314 = vadd.f32 %v297, %v312
      %v315 = vxor.u32 %v313, 2147483648
      %v316 = vxor.u32 %v314, 2147483648
      %v317 = vmul.f32 %v315, 1.442695
      %v318 = vpow.pop %v317
      %v319 = vmul.f32 %v316, 1.442695
      %v320 = vpow.pop %v319
      %v321 = vadd.f32 %v318, 1.0
      %v322 = vadd.f32 %v320, 1.0
      %v323 = vrcp.pop %v321
      %v324 = vmul.f32 1.0, %v323
      %v325 = vrcp.pop %v322
      %v326 = vmul.f32 1.0, %v325
      %v329 = vrot.slane %v326, 7
      %vm330 = vcmask 1041409
      %v331 = vsel %vm330, %v329, %v324
      %333 = vst [vmem:[#allocation6] sm:$0x3] %v331
    $region25: #{tpu_custom_call.1} parent=1 // pred_fallthru
      _
    // Predicated region
    $region26: #{tpu_custom_call.1} parent=1 // pred_check
      _
    $region27: #{tpu_custom_call.1} parent=1 // pred_check_branch
      %335 = sbr.rel (0) target = $region29
    $region28: #{tpu_custom_call.1} parent=1 // pred_region
      %s337 = ssub.s32 32, 32
      %338 = vsyncadd [#allocation5], %s337
      %s340 = sshll.u32 [#allocation6], 4
      %s341 = int_to_ptr.vmem [resolvable:$true] %s340
      %343 = dma.vmem_to_hbm [thread:$0]  %s341, 32, %s3, [#allocation5]
    $region29: #{tpu_custom_call.1} parent=1 // pred_fallthru
      _
    // Predicated region
    $region30: #{tpu_custom_call.1} parent=1 // pred_check
      _
    $region31: #{tpu_custom_call.1} parent=1 // pred_check_branch
      %345 = sbr.rel (0) target = $region33
    $region32: #{tpu_custom_call.1} parent=1 // pred_region
      %346 = dma.done [#allocation5], 32
    $region33: #{tpu_custom_call.1} parent=1 // pred_fallthru
      _
    %347 = vsyncpa [#allocation4], 1
    %348 = vsyncpa [#allocation5], 1

</llo_original>
